<compile_context>
chip_gen: v7x
topology: tpu7x:2x2x1
jax: 0.10.0
libtpu: 0.0.40
codegen_flags: <defaults>
</compile_context>

<pallas_src>
import functools

import jax
import jax.numpy as jnp
from jax.experimental import pallas as pl
from jax.experimental.pallas import tpu as pltpu


def _ctx_weight_kernel(idx_ref, w_ref, out_ref, hid_ref, *,
                       n_time, n_dev, batch, hidden, n_models):
    """Fused embedding-gather + combiner + predictor + softmax.

    idx_ref : SMEM [2*batch] int32  (first `batch` = time idx, rest = device idx)
    w_ref   : VMEM [n_time + n_dev + hidden + 1, hidden] f32
              rows [0, n_time)              : time_emb @ W1[:H] + b1   (folded)
              rows [n_time, n_time+n_dev)   : dev_emb  @ W1[H:]        (folded)
              rows [base,  base+hidden)     : W2, zero padded to width hidden
              row  [base+hidden]            : b2, zero padded to width hidden
    out_ref : VMEM [batch, n_models]
    hid_ref : VMEM scratch [batch, hidden]
    """
    base_dev = n_time
    base_w2 = n_time + n_dev

    # Embedding gather + (pre-folded) combiner linear: one dynamic row load per
    # context index, addressed by SMEM scalars.  No one-hot MXU work.
    for b in range(batch):
        t = idx_ref[b]
        d = idx_ref[batch + b]
        hid_ref[b:b + 1, :] = (w_ref[pl.ds(t, 1), :] +
                               w_ref[pl.ds(base_dev + d, 1), :])

    hid = jnp.maximum(hid_ref[...], 0.0)                        # ReLU, [B, H]

    # Predictor linear — the single remaining MXU matmul.  W2 is stored zero
    # padded to lane width `hidden`; drop the pad columns before the softmax.
    w2b = w_ref[base_w2:base_w2 + hidden + 1, :]                # [H+1, H]
    logits_full = (jnp.dot(hid, w2b[:hidden, :],
                           preferred_element_type=jnp.float32)
                   + w2b[hidden:, :])                           # [B, H]
    logits = logits_full[:, :n_models]                          # [B, M]

    # Softmax over the models axis (exact divide keeps sum-to-1 within 1e-5).
    m = jnp.max(logits, axis=-1, keepdims=True)
    e = jnp.exp(logits - m)
    out_ref[...] = e / jnp.sum(e, axis=-1, keepdims=True)


def prepare_packed_params(params):
    """One-time packing at param-load time (hoisted out of the per-call path).

    Folds the combiner Linear into the embedding tables (exact: everything
    before the ReLU is linear) and merges every weight into one VMEM operand.
    """
    time_tab = params["time_emb"]     # [n_time, H]
    dev_tab = params["dev_emb"]       # [n_dev, H]
    w1 = params["w1"]                 # [2H, H]   (input-major: y = x @ W1 + b1)
    b1 = params["b1"]                 # [1, H]
    w2 = params["w2"]                 # [H, M]
    b2 = params["b2"]                 # [1, M]

    n_time, H = time_tab.shape
    n_dev = dev_tab.shape[0]
    M = w2.shape[1]

    hi = jax.lax.Precision.HIGHEST
    t_fold = jnp.dot(time_tab, w1[:H, :], precision=hi) + b1    # [n_time, H]
    d_fold = jnp.dot(dev_tab, w1[H:, :], precision=hi)          # [n_dev,  H]

    w2_pad = jnp.zeros((H, H), jnp.float32).at[:, :M].set(w2)   # [H, H]
    b2_pad = jnp.zeros((1, H), jnp.float32).at[:, :M].set(b2)   # [1, H]

    weights = jnp.concatenate([t_fold, d_fold, w2_pad, b2_pad], axis=0)
    meta = dict(n_time=int(n_time), n_dev=int(n_dev),
                hidden=int(H), n_models=int(M))
    return weights, meta


@functools.partial(jax.jit,
                   static_argnames=("n_time", "n_dev", "hidden", "n_models"))
def _forward(time_indices, device_indices, weights, *,
             n_time, n_dev, hidden, n_models):
    batch = time_indices.shape[0]

    # Torch nn.Embedding raises on out-of-range indices; we clamp so the
    # in-kernel dynamic gather always stays inside the weights block.
    t_idx = jnp.clip(time_indices.astype(jnp.int32), 0, n_time - 1)
    d_idx = jnp.clip(device_indices.astype(jnp.int32), 0, n_dev - 1)
    idx_flat = jnp.concatenate([t_idx, d_idx], axis=0)          # [2B] int32

    rows = n_time + n_dev + hidden + 1
    kernel = functools.partial(_ctx_weight_kernel, n_time=n_time, n_dev=n_dev,
                               batch=batch, hidden=hidden, n_models=n_models)

    return pl.pallas_call(
        kernel,
        out_shape=jax.ShapeDtypeStruct((batch, n_models), jnp.float32),
        grid_spec=pltpu.PrefetchScalarGridSpec(
            num_scalar_prefetch=1,              # idx_flat -> SMEM
            grid=(1,),
            in_specs=[pl.BlockSpec((rows, hidden), lambda i, idx: (0, 0))],
            out_specs=pl.BlockSpec((batch, n_models), lambda i, idx: (0, 0)),
            scratch_shapes=[pltpu.VMEM((batch, hidden), jnp.float32)],
        ),
    )(idx_flat, weights)


def contextual_weight_net(time_indices, device_indices, weights, meta):
    """time_indices/device_indices: [B] int. Returns [B, n_models] float32."""
    return _forward(time_indices, device_indices, weights, **meta)


def init_params(key, n_time=4, n_device=4, n_models=3, hidden=16):
    k1, k2, k3, k4 = jax.random.split(key, 4)
    # nn.init.normal_(mean=0, std=0.01) for embeddings.
    time_emb = 0.01 * jax.random.normal(k1, (n_time, hidden), jnp.float32)
    dev_emb = 0.01 * jax.random.normal(k2, (n_device, hidden), jnp.float32)

    # xavier_uniform for linear weights, zeros for biases.
    def xavier(k, fan_in, fan_out):
        limit = jnp.sqrt(6.0 / (fan_in + fan_out))
        # stored input-major: [fan_in, fan_out] so y = x @ W + b
        return jax.random.uniform(k, (fan_in, fan_out), jnp.float32,
                                  minval=-limit, maxval=limit)

    w1 = xavier(k3, 2 * hidden, hidden)
    b1 = jnp.zeros((1, hidden), jnp.float32)
    w2 = xavier(k4, hidden, n_models)
    b2 = jnp.zeros((1, n_models), jnp.float32)
    return {"time_emb": time_emb, "dev_emb": dev_emb,
            "w1": w1, "b1": b1, "w2": w2, "b2": b2}


def _reference(time_indices, device_indices, params):
    te = jnp.take(params["time_emb"], time_indices, axis=0)
    de = jnp.take(params["dev_emb"], device_indices, axis=0)
    x = jnp.concatenate([te, de], axis=1)
    h = jnp.maximum(x @ params["w1"] + params["b1"], 0.0)
    logits = h @ params["w2"] + params["b2"]
    return jax.nn.softmax(logits, axis=1)


if __name__ == "__main__":
    key = jax.random.PRNGKey(0)
    kp, kt, kd = jax.random.split(key, 3)

    n_time, n_device, n_models, hidden = 4, 4, 3, 16
    batch = 8

    params = init_params(kp, n_time, n_device, n_models, hidden)
    # One-time packing (param-load time), NOT on the per-call path.
    weights, meta = prepare_packed_params(params)
    weights = jax.block_until_ready(weights)

    time_indices = jax.random.randint(kt, (batch,), 0, n_time, dtype=jnp.int32)
    device_indices = jax.random.randint(kd, (batch,), 0, n_device, dtype=jnp.int32)

    out = contextual_weight_net(time_indices, device_indices, weights, meta)
    out = jax.block_until_ready(out)

    ref = _reference(time_indices, device_indices, params)
    assert out.shape == (batch, n_models)
    assert jnp.allclose(out, ref, atol=1e-5, rtol=1e-5)
    assert jnp.allclose(jnp.sum(out, axis=1), 1.0, atol=1e-5)

    print("KERNEL_OK")
</pallas_src>

<mosaic_0001>
module attributes {stable_mosaic.version = 11 : i64} {
  func.func @_ctx_weight_kernel(%arg0: i32, %arg1: memref<16xi32, #tpu.memory_space<smem>>, %arg2: memref<25x16xf32, #tpu.memory_space<vmem>>, %arg3: memref<8x3xf32, #tpu.memory_space<vmem>>, %arg4: memref<8x16xf32, #tpu.memory_space<vmem>>) attributes {dimension_semantics = [#tpu.dimension_semantics<arbitrary>], iteration_bounds = array<i64: 1>, scalar_prefetch = 1 : i64, scratch_operands = 1 : i64, tpu.core_type = #tpu.core_type<tc>, window_params = [{pipeline_mode = #tpu.pipeline_mode<synchronous>, transform_indices = @transform_0, window_bounds = array<i64: 25, 16>}, {pipeline_mode = #tpu.pipeline_mode<synchronous>, transform_indices = @transform_1, window_bounds = array<i64: 8, 3>}]} {
    %c0 = arith.constant 0 : index
    %0 = memref.load %arg1[%c0] : memref<16xi32, #tpu.memory_space<smem>>
    %c8 = arith.constant 8 : index
    %1 = memref.load %arg1[%c8] : memref<16xi32, #tpu.memory_space<smem>>
    %2 = arith.index_cast %0 : i32 to index
    %c0_0 = arith.constant 0 : index
    %3 = vector.load %arg2[%2, %c0_0] : memref<25x16xf32, #tpu.memory_space<vmem>>, vector<1x16xf32>
    %c4_i32 = arith.constant 4 : i32
    %4 = arith.addi %c4_i32, %1 : i32
    %5 = arith.index_cast %4 : i32 to index
    %c0_1 = arith.constant 0 : index
    %6 = vector.load %arg2[%5, %c0_1] : memref<25x16xf32, #tpu.memory_space<vmem>>, vector<1x16xf32>
    %7 = arith.addf %3, %6 : vector<1x16xf32>
    %c0_2 = arith.constant 0 : index
    %c0_3 = arith.constant 0 : index
    %8 = vector.load %arg4[%c0_2, %c0_3] : memref<8x16xf32, #tpu.memory_space<vmem>>, vector<1x16xf32>
    tpu.vector_store %arg4[%c0_2, %c0_3], %7 {strides = array<i32>} : memref<8x16xf32, #tpu.memory_space<vmem>>, vector<1x16xf32>,
    %c1 = arith.constant 1 : index
    %9 = memref.load %arg1[%c1] : memref<16xi32, #tpu.memory_space<smem>>
    %c9 = arith.constant 9 : index
    %10 = memref.load %arg1[%c9] : memref<16xi32, #tpu.memory_space<smem>>
    %11 = arith.index_cast %9 : i32 to index
    %c0_4 = arith.constant 0 : index
    %12 = vector.load %arg2[%11, %c0_4] : memref<25x16xf32, #tpu.memory_space<vmem>>, vector<1x16xf32>
    %c4_i32_5 = arith.constant 4 : i32
    %13 = arith.addi %c4_i32_5, %10 : i32
    %14 = arith.index_cast %13 : i32 to index
    %c0_6 = arith.constant 0 : index
    %15 = vector.load %arg2[%14, %c0_6] : memref<25x16xf32, #tpu.memory_space<vmem>>, vector<1x16xf32>
    %16 = arith.addf %12, %15 : vector<1x16xf32>
    %c1_7 = arith.constant 1 : index
    %c0_8 = arith.constant 0 : index
    %17 = vector.load %arg4[%c1_7, %c0_8] : memref<8x16xf32, #tpu.memory_space<vmem>>, vector<1x16xf32>
    tpu.vector_store %arg4[%c1_7, %c0_8], %16 {strides = array<i32>} : memref<8x16xf32, #tpu.memory_space<vmem>>, vector<1x16xf32>,
    %c2 = arith.constant 2 : index
    %18 = memref.load %arg1[%c2] : memref<16xi32, #tpu.memory_space<smem>>
    %c10 = arith.constant 10 : index
    %19 = memref.load %arg1[%c10] : memref<16xi32, #tpu.memory_space<smem>>
    %20 = arith.index_cast %18 : i32 to index
    %c0_9 = arith.constant 0 : index
    %21 = vector.load %arg2[%20, %c0_9] : memref<25x16xf32, #tpu.memory_space<vmem>>, vector<1x16xf32>
    %c4_i32_10 = arith.constant 4 : i32
    %22 = arith.addi %c4_i32_10, %19 : i32
    %23 = arith.index_cast %22 : i32 to index
    %c0_11 = arith.constant 0 : index
    %24 = vector.load %arg2[%23, %c0_11] : memref<25x16xf32, #tpu.memory_space<vmem>>, vector<1x16xf32>
    %25 = arith.addf %21, %24 : vector<1x16xf32>
    %c2_12 = arith.constant 2 : index
    %c0_13 = arith.constant 0 : index
    %26 = vector.load %arg4[%c2_12, %c0_13] : memref<8x16xf32, #tpu.memory_space<vmem>>, vector<1x16xf32>
    tpu.vector_store %arg4[%c2_12, %c0_13], %25 {strides = array<i32>} : memref<8x16xf32, #tpu.memory_space<vmem>>, vector<1x16xf32>,
    %c3 = arith.constant 3 : index
    %27 = memref.load %arg1[%c3] : memref<16xi32, #tpu.memory_space<smem>>
    %c11 = arith.constant 11 : index
    %28 = memref.load %arg1[%c11] : memref<16xi32, #tpu.memory_space<smem>>
    %29 = arith.index_cast %27 : i32 to index
    %c0_14 = arith.constant 0 : index
    %30 = vector.load %arg2[%29, %c0_14] : memref<25x16xf32, #tpu.memory_space<vmem>>, vector<1x16xf32>
    %c4_i32_15 = arith.constant 4 : i32
    %31 = arith.addi %c4_i32_15, %28 : i32
    %32 = arith.index_cast %31 : i32 to index
    %c0_16 = arith.constant 0 : index
    %33 = vector.load %arg2[%32, %c0_16] : memref<25x16xf32, #tpu.memory_space<vmem>>, vector<1x16xf32>
    %34 = arith.addf %30, %33 : vector<1x16xf32>
    %c3_17 = arith.constant 3 : index
    %c0_18 = arith.constant 0 : index
    %35 = vector.load %arg4[%c3_17, %c0_18] : memref<8x16xf32, #tpu.memory_space<vmem>>, vector<1x16xf32>
    tpu.vector_store %arg4[%c3_17, %c0_18], %34 {strides = array<i32>} : memref<8x16xf32, #tpu.memory_space<vmem>>, vector<1x16xf32>,
    %c4 = arith.constant 4 : index
    %36 = memref.load %arg1[%c4] : memref<16xi32, #tpu.memory_space<smem>>
    %c12 = arith.constant 12 : index
    %37 = memref.load %arg1[%c12] : memref<16xi32, #tpu.memory_space<smem>>
    %38 = arith.index_cast %36 : i32 to index
    %c0_19 = arith.constant 0 : index
    %39 = vector.load %arg2[%38, %c0_19] : memref<25x16xf32, #tpu.memory_space<vmem>>, vector<1x16xf32>
    %c4_i32_20 = arith.constant 4 : i32
    %40 = arith.addi %c4_i32_20, %37 : i32
    %41 = arith.index_cast %40 : i32 to index
    %c0_21 = arith.constant 0 : index
    %42 = vector.load %arg2[%41, %c0_21] : memref<25x16xf32, #tpu.memory_space<vmem>>, vector<1x16xf32>
    %43 = arith.addf %39, %42 : vector<1x16xf32>
    %c4_22 = arith.constant 4 : index
    %c0_23 = arith.constant 0 : index
    %44 = vector.load %arg4[%c4_22, %c0_23] : memref<8x16xf32, #tpu.memory_space<vmem>>, vector<1x16xf32>
    tpu.vector_store %arg4[%c4_22, %c0_23], %43 {strides = array<i32>} : memref<8x16xf32, #tpu.memory_space<vmem>>, vector<1x16xf32>,
    %c5 = arith.constant 5 : index
    %45 = memref.load %arg1[%c5] : memref<16xi32, #tpu.memory_space<smem>>
    %c13 = arith.constant 13 : index
    %46 = memref.load %arg1[%c13] : memref<16xi32, #tpu.memory_space<smem>>
    %47 = arith.index_cast %45 : i32 to index
    %c0_24 = arith.constant 0 : index
    %48 = vector.load %arg2[%47, %c0_24] : memref<25x16xf32, #tpu.memory_space<vmem>>, vector<1x16xf32>
    %c4_i32_25 = arith.constant 4 : i32
    %49 = arith.addi %c4_i32_25, %46 : i32
    %50 = arith.index_cast %49 : i32 to index
    %c0_26 = arith.constant 0 : index
    %51 = vector.load %arg2[%50, %c0_26] : memref<25x16xf32, #tpu.memory_space<vmem>>, vector<1x16xf32>
    %52 = arith.addf %48, %51 : vector<1x16xf32>
    %c5_27 = arith.constant 5 : index
    %c0_28 = arith.constant 0 : index
    %53 = vector.load %arg4[%c5_27, %c0_28] : memref<8x16xf32, #tpu.memory_space<vmem>>, vector<1x16xf32>
    tpu.vector_store %arg4[%c5_27, %c0_28], %52 {strides = array<i32>} : memref<8x16xf32, #tpu.memory_space<vmem>>, vector<1x16xf32>,
    %c6 = arith.constant 6 : index
    %54 = memref.load %arg1[%c6] : memref<16xi32, #tpu.memory_space<smem>>
    %c14 = arith.constant 14 : index
    %55 = memref.load %arg1[%c14] : memref<16xi32, #tpu.memory_space<smem>>
    %56 = arith.index_cast %54 : i32 to index
    %c0_29 = arith.constant 0 : index
    %57 = vector.load %arg2[%56, %c0_29] : memref<25x16xf32, #tpu.memory_space<vmem>>, vector<1x16xf32>
    %c4_i32_30 = arith.constant 4 : i32
    %58 = arith.addi %c4_i32_30, %55 : i32
    %59 = arith.index_cast %58 : i32 to index
    %c0_31 = arith.constant 0 : index
    %60 = vector.load %arg2[%59, %c0_31] : memref<25x16xf32, #tpu.memory_space<vmem>>, vector<1x16xf32>
    %61 = arith.addf %57, %60 : vector<1x16xf32>
    %c6_32 = arith.constant 6 : index
    %c0_33 = arith.constant 0 : index
    %62 = vector.load %arg4[%c6_32, %c0_33] : memref<8x16xf32, #tpu.memory_space<vmem>>, vector<1x16xf32>
    tpu.vector_store %arg4[%c6_32, %c0_33], %61 {strides = array<i32>} : memref<8x16xf32, #tpu.memory_space<vmem>>, vector<1x16xf32>,
    %c7 = arith.constant 7 : index
    %63 = memref.load %arg1[%c7] : memref<16xi32, #tpu.memory_space<smem>>
    %c15 = arith.constant 15 : index
    %64 = memref.load %arg1[%c15] : memref<16xi32, #tpu.memory_space<smem>>
    %65 = arith.index_cast %63 : i32 to index
    %c0_34 = arith.constant 0 : index
    %66 = vector.load %arg2[%65, %c0_34] : memref<25x16xf32, #tpu.memory_space<vmem>>, vector<1x16xf32>
    %c4_i32_35 = arith.constant 4 : i32
    %67 = arith.addi %c4_i32_35, %64 : i32
    %68 = arith.index_cast %67 : i32 to index
    %c0_36 = arith.constant 0 : index
    %69 = vector.load %arg2[%68, %c0_36] : memref<25x16xf32, #tpu.memory_space<vmem>>, vector<1x16xf32>
    %70 = arith.addf %66, %69 : vector<1x16xf32>
    %c7_37 = arith.constant 7 : index
    %c0_38 = arith.constant 0 : index
    %71 = vector.load %arg4[%c7_37, %c0_38] : memref<8x16xf32, #tpu.memory_space<vmem>>, vector<1x16xf32>
    tpu.vector_store %arg4[%c7_37, %c0_38], %70 {strides = array<i32>} : memref<8x16xf32, #tpu.memory_space<vmem>>, vector<1x16xf32>,
    %c0_39 = arith.constant 0 : index
    %c0_40 = arith.constant 0 : index
    %72 = vector.load %arg4[%c0_39, %c0_40] : memref<8x16xf32, #tpu.memory_space<vmem>>, vector<8x16xf32>
    %cst = arith.constant 0.000000e+00 : f32
    %73 = vector.broadcast %cst : f32 to vector<8x16xf32>
    %74 = arith.maximumf %72, %73 : vector<8x16xf32>
    %c8_41 = arith.constant 8 : index
    %c0_42 = arith.constant 0 : index
    %75 = vector.load %arg2[%c8_41, %c0_42] : memref<25x16xf32, #tpu.memory_space<vmem>>, vector<17x16xf32>
    %76 = vector.extract_strided_slice %75 {offsets = [0, 0], sizes = [16, 16], strides = [1, 1]} : vector<17x16xf32> to vector<16x16xf32>
    %cst_43 = arith.constant dense<0.000000e+00> : vector<8x16xf32>
    %77 = tpu.matmul %74, %76, %cst_43 {dimension_numbers = #tpu.dot_dimension_numbers<[1], [0], [0], [1], [0, 0, 1, 1], [], []>} : vector<8x16xf32>, vector<16x16xf32>, vector<8x16xf32> -> vector<8x16xf32>
    %78 = vector.extract_strided_slice %75 {offsets = [16, 0], sizes = [1, 16], strides = [1, 1]} : vector<17x16xf32> to vector<1x16xf32>
    %79 = vector.broadcast %78 : vector<1x16xf32> to vector<8x16xf32>
    %80 = arith.addf %77, %79 : vector<8x16xf32>
    %81 = vector.extract_strided_slice %80 {offsets = [0, 0], sizes = [8, 3], strides = [1, 1]} : vector<8x16xf32> to vector<8x3xf32>
    %cst_44 = arith.constant dense<0xFF800000> : vector<8xf32>
    %82 = vector.multi_reduction <maximumf>, %81, %cst_44 [1] : vector<8x3xf32> to vector<8xf32>
    %83 = vector.shape_cast %82 : vector<8xf32> to vector<8x1xf32>
    %84 = vector.broadcast %83 : vector<8x1xf32> to vector<8x3xf32>
    %85 = arith.subf %81, %84 : vector<8x3xf32>
    %86 = math.exp %85 : vector<8x3xf32>
    %cst_45 = arith.constant dense<0.000000e+00> : vector<8xf32>
    %87 = vector.multi_reduction <add>, %86, %cst_45 [1] : vector<8x3xf32> to vector<8xf32>
    %88 = vector.shape_cast %87 : vector<8xf32> to vector<8x1xf32>
    %89 = vector.broadcast %88 : vector<8x1xf32> to vector<8x3xf32>
    %90 = arith.divf %86, %89 : vector<8x3xf32>
    %c0_46 = arith.constant 0 : index
    %c0_47 = arith.constant 0 : index
    %91 = vector.load %arg3[%c0_46, %c0_47] : memref<8x3xf32, #tpu.memory_space<vmem>>, vector<8x3xf32>
    tpu.vector_store %arg3[%c0_46, %c0_47], %90 {strides = array<i32>} : memref<8x3xf32, #tpu.memory_space<vmem>>, vector<8x3xf32>,
    return
  }
  func.func @transform_0(%arg0: i32, %arg1: memref<16xi32, #tpu.memory_space<smem>>) -> (i32, i32) {
    %c0_i32 = arith.constant 0 : i32
    %c0_i32_0 = arith.constant 0 : i32
    %c0_i32_1 = arith.constant 0 : i32
    return %c0_i32, %c0_i32_0 : i32, i32
  }
  func.func @transform_1(%arg0: i32, %arg1: memref<16xi32, #tpu.memory_space<smem>>) -> (i32, i32) {
    %c0_i32 = arith.constant 0 : i32
    %c0_i32_0 = arith.constant 0 : i32
    %c0_i32_1 = arith.constant 0 : i32
    return %c0_i32, %c0_i32_0 : i32, i32
  }
}

</mosaic_0001>

<llo_original>
// kernel: _forward.1
$region0: #{_forward.1}
  #allocation0 [shape = 'u32[]', space=smem, size = 0x4, offset = 0x4, fixed_abs, tag = 'smem constant byte address 0x4 - core index']
  #allocation1 [shape = 'u32[144,128]{1,0:T(1,128)}', space=vmem, size = 0x12000, scoped, tag = 'internal scratch']
  #allocation2 [shape = 'f32[8,16]{1,0:T(8,128)}', space=vmem, size = 0x1000, scoped, tag = 'scratch operand']
  #allocation3 [shape = 's32[1]{0}', space=sflag, size = 0x4, scoped, tag = 'scoped memory for _forward.1']
  #allocation4 [shape = 'u8[512]{0}', space=smem, size = 0x200, scoped, tag = 'prefetched SMEM operand 0']
  %s0 = inlined_call_operand.vmem [shape: s32[16], index: 0, kind: input, shape index: {}]
  %s1 = inlined_call_operand.vmem [shape: f32[25,16], index: 1, kind: input, shape index: {}]
  %s2 = inlined_call_operand.vmem [shape: f32[8,3], index: 2, kind: output, shape index: {}]
  %s3 = sld [smem:[#allocation0]]
  $region14: #{_forward.1} parent=0
    _
  %s5 = ssub.s32 1, %s3
  %s6 = scalar_select 0, %s5, %s3
  %s7 = sshll.u32 %s0, 4
  %s8 = int_to_ptr.vmem [resolvable:$true] %s7
  %10 = dma.vmem_to_smem %s8, 16, [#allocation4], [#allocation3]
  %11 = dma.done [#allocation3], 16
  %12 = sfence
  // Predicated region
  $region2: #{_forward.1} parent=0 // pred_check
    _
  $region3: #{_forward.1} parent=0 // pred_check_branch
    %14 = sbr.rel (0) target = $region5
  $region4: #{_forward.1} parent=0 // pred_region
    _
  $region5: #{_forward.1} parent=0 // pred_fallthru
    _
  %s15 = sld [smem:[#allocation4]]
  %s16 = sld [smem:[#allocation4 + $0x8]]
  %s17 = scalar_lea.vmem %s1, %s15
  %v18 = vld [vmem:[%s17] sm:$0x1]
  %s19 = sadd.s32 %s16, 4
  %s20 = scalar_lea.vmem %s1, %s19
  %v21 = vld [vmem:[%s20] sm:$0x1]
  %v22 = vadd.f32 %v18, %v21
  %vm23 = vcmask 122880
  %24 = vst.msk [vmem:[#allocation2] sm:$0x1] %vm23, %v22
  %s25 = sld [smem:[#allocation4 + $0x1]]
  %s26 = sld [smem:[#allocation4 + $0x9]]
  %s27 = scalar_lea.vmem %s1, %s25
  %v28 = vld [vmem:[%s27] sm:$0x1]
  %s29 = sadd.s32 %s26, 4
  %s30 = scalar_lea.vmem %s1, %s29
  %v31 = vld [vmem:[%s30] sm:$0x1]
  %v32 = vadd.f32 %v28, %v31
  %33 = vst.msk [vmem:[#allocation2 + $0x1] sm:$0x1] %vm23, %v32
  %s34 = sld [smem:[#allocation4 + $0x2]]
  %s35 = sld [smem:[#allocation4 + $0xa]]
  %s36 = scalar_lea.vmem %s1, %s34
  %v37 = vld [vmem:[%s36] sm:$0x1]
  %s38 = sadd.s32 %s35, 4
  %s39 = scalar_lea.vmem %s1, %s38
  %v40 = vld [vmem:[%s39] sm:$0x1]
  %v41 = vadd.f32 %v37, %v40
  %42 = vst.msk [vmem:[#allocation2 + $0x2] sm:$0x1] %vm23, %v41
  %s43 = sld [smem:[#allocation4 + $0x3]]
  %s44 = sld [smem:[#allocation4 + $0xb]]
  %s45 = scalar_lea.vmem %s1, %s43
  %v46 = vld [vmem:[%s45] sm:$0x1]
  %s47 = sadd.s32 %s44, 4
  %s48 = scalar_lea.vmem %s1, %s47
  %v49 = vld [vmem:[%s48] sm:$0x1]
  %v50 = vadd.f32 %v46, %v49
  %51 = vst.msk [vmem:[#allocation2 + $0x3] sm:$0x1] %vm23, %v50
  %s52 = sld [smem:[#allocation4 + $0x4]]
  %s53 = sld [smem:[#allocation4 + $0xc]]
  %s54 = scalar_lea.vmem %s1, %s52
  %v55 = vld [vmem:[%s54] sm:$0x1]
  %s56 = sadd.s32 %s53, 4
  %s57 = scalar_lea.vmem %s1, %s56
  %v58 = vld [vmem:[%s57] sm:$0x1]
  %v59 = vadd.f32 %v55, %v58
  %60 = vst.msk [vmem:[#allocation2 + $0x4] sm:$0x1] %vm23, %v59
  %s61 = sld [smem:[#allocation4 + $0x5]]
  %s62 = sld [smem:[#allocation4 + $0xd]]
  %s63 = scalar_lea.vmem %s1, %s61
  %v64 = vld [vmem:[%s63] sm:$0x1]
  %s65 = sadd.s32 %s62, 4
  %s66 = scalar_lea.vmem %s1, %s65
  %v67 = vld [vmem:[%s66] sm:$0x1]
  %v68 = vadd.f32 %v64, %v67
  %69 = vst.msk [vmem:[#allocation2 + $0x5] sm:$0x1] %vm23, %v68
  %s70 = sld [smem:[#allocation4 + $0x6]]
  %s71 = sld [smem:[#allocation4 + $0xe]]
  %s72 = scalar_lea.vmem %s1, %s70
  %v73 = vld [vmem:[%s72] sm:$0x1]
  %s74 = sadd.s32 %s71, 4
  %s75 = scalar_lea.vmem %s1, %s74
  %v76 = vld [vmem:[%s75] sm:$0x1]
  %v77 = vadd.f32 %v73, %v76
  %78 = vst.msk [vmem:[#allocation2 + $0x6] sm:$0x1] %vm23, %v77
  %s79 = sld [smem:[#allocation4 + $0x7]]
  %s80 = sld [smem:[#allocation4 + $0xf]]
  %s81 = scalar_lea.vmem %s1, %s79
  %v82 = vld [vmem:[%s81] sm:$0x1]
  %s83 = sadd.s32 %s80, 4
  %s84 = scalar_lea.vmem %s1, %s83
  %v85 = vld [vmem:[%s84] sm:$0x1]
  %v86 = vadd.f32 %v82, %v85
  %87 = vst.msk [vmem:[#allocation2 + $0x7] sm:$0x1] %vm23, %v86
  %v88 = vld [vmem:[#allocation2] sm:$0xff]
  %v89 = vmax.f32 %v88, 0.0
  %v90 = vld [vmem:[%s1 + $0x8] sm:$0xff]
  %v91 = vld [vmem:[%s1 + $0x10] sm:$0xff]
  %v92 = vld [vmem:[%s1 + $0x18] sm:$0x1]
  %v93 = vlaneseq
  %v94 = vshrl.u32 %v93, 7
  %v95 = vsub.s32 0, %v94
  %v96 = vrot.slane %v92, %v95
  %vm97 = vcmask 130048
  %v99 = vsel %vm97, %v89, 0
  %101 = vmatprep.subr.mxu0 0.0
  %102 = vmatpush1.msra.mxu0 %v90
  %103 = vmatprep.subr.mxu0 0.0
  %104 = vmatpush1.msra.mxu0 %v91
  %105 = vmatprep.subr.mxu0 0.0
  %106 = vmatpush1.msra.mxu0 0.0
  %107 = vmatprep.subr.mxu0 0.0
  %108 = vmatpush1.msra.mxu0 0.0
  %109 = vmatprep.subr.mxu0 0.0
  %110 = vmatpush1.msra.mxu0 0.0
  %111 = vmatprep.subr.mxu0 0.0
  %112 = vmatpush1.msra.mxu0 0.0
  %113 = vmatprep.subr.mxu0 0.0
  %114 = vmatpush1.msra.mxu0 0.0
  %115 = vmatprep.subr.mxu0 0.0
  %116 = vmatpush1.msra.mxu0 0.0
  %117 = vmatprep.subr.mxu0 0.0
  %118 = vmatpush1.msra.mxu0 0.0
  %119 = vmatprep.subr.mxu0 0.0
  %120 = vmatpush1.msra.mxu0 0.0
  %121 = vmatprep.subr.mxu0 0.0
  %122 = vmatpush1.msra.mxu0 0.0
  %123 = vmatprep.subr.mxu0 0.0
  %124 = vmatpush1.msra.mxu0 0.0
  %125 = vmatprep.subr.mxu0 0.0
  %126 = vmatpush1.msra.mxu0 0.0
  %127 = vmatprep.subr.mxu0 0.0
  %128 = vmatpush1.msra.mxu0 0.0
  %129 = vmatprep.subr.mxu0 0.0
  %130 = vmatpush1.msra.mxu0 0.0
  %131 = vmatprep.subr.mxu0 0.0
  %132 = vmatpush1.msra.mxu0 0.0
  %133 = vmatprep.subr.mxu0 0.0
  %134 = vmatpush1.msra.mxu0 0.0
  %135 = vmatprep.subr.mxu0 0.0
  %136 = vmatpush1.msra.mxu0 0.0
  %137 = vmatprep.subr.mxu0 0.0
  %138 = vmatpush1.msra.mxu0 0.0
  %139 = vmatprep.subr.mxu0 0.0
  %140 = vmatpush1.msra.mxu0 0.0
  %141 = vmatprep.subr.mxu0 0.0
  %142 = vmatpush1.msra.mxu0 0.0
  %143 = vmatprep.subr.mxu0 0.0
  %144 = vmatpush1.msra.mxu0 0.0
  %145 = vmatprep.subr.mxu0 0.0
  %146 = vmatpush1.msra.mxu0 0.0
  %147 = vmatprep.subr.mxu0 0.0
  %148 = vmatpush1.msra.mxu0 0.0
  %149 = vmatprep.subr.mxu0 0.0
  %150 = vmatpush1.msra.mxu0 0.0
  %151 = vmatprep.subr.mxu0 0.0
  %152 = vmatpush1.msra.mxu0 0.0
  %153 = vmatprep.subr.mxu0 0.0
  %154 = vmatpush1.msra.mxu0 0.0
  %155 = vmatprep.subr.mxu0 0.0
  %156 = vmatpush1.msra.mxu0 0.0
  %157 = vmatprep.subr.mxu0 0.0
  %158 = vmatpush1.msra.mxu0 0.0
  %159 = vmatprep.subr.mxu0 0.0
  %160 = vmatpush1.msra.mxu0 0.0
  %161 = vmatprep.subr.mxu0 0.0
  %162 = vmatpush1.msra.mxu0 0.0
  %163 = vmatprep.subr.mxu0 0.0
  %164 = vmatpush1.msra.mxu0 0.0
  %165 = vmatprep.mubr.f32.mxu0 0.0
  %166 = vmatmul.mubr.f32.gmra.mrb[0].mxu0 %v99
  %v167 = vpop.f32.mrb[0].mxu0
  %v168 = vadd.f32 %v96, %v167
  %v169 = vpop.f32.mrb[0].mxu0
  %170 = vdwg.mxu0
  %vm171 = vcmask 23552
  %v172 = vsel %vm171, %v168, -inf
  %173 = vmax.xlane.f32.xlu0 %v172
  %v174 = vpop.xlane.xlu0 %173
  %v175 = vsub.f32 %v168, %v174
  %v176 = vmul.f32 %v175, 1.442695
  %v177 = vpow.pop %v176
  %v178 = vsel %vm171, %v177, 0.0
  %179 = vadd.xlane.f32.xlu0 %v178
  %v180 = vpop.xlane.xlu0 %179
  %v181 = vrcp.pop %v180
  %v182 = vmul.f32 %v177, %v181
  %183 = vst.msk [vmem:[%s2] sm:$0xff] %vm171, %v182
  // Predicated region
  $region6: #{_forward.1} parent=0 // pred_check
    _
  $region7: #{_forward.1} parent=0 // pred_check_branch
    %185 = sbr.rel (0) target = $region9
  $region8: #{_forward.1} parent=0 // pred_region
    _
  $region9: #{_forward.1} parent=0 // pred_fallthru
    _
  // Predicated region
  $region10: #{_forward.1} parent=0 // pred_check
    _
  $region11: #{_forward.1} parent=0 // pred_check_branch
    %187 = sbr.rel (0) target = $region13
  $region12: #{_forward.1} parent=0 // pred_region
    _
  $region13: #{_forward.1} parent=0 // pred_fallthru
    _

</llo_original>
